<compile_context>
chip_gen: v5e
topology: v5e:2x2
jax: 0.10.0
libtpu: 0.0.40
codegen_flags: <defaults>
</compile_context>

<pallas_src>
import functools

import jax
import jax.numpy as jnp
from jax import lax
from jax.experimental import pallas as pl
from jax.experimental.pallas import tpu as pltpu

_LANES = 128
_SUBLANES = 8
_TILE = _SUBLANES * _LANES        # 1024 elements = one (8, 128) f32 vreg tile
_MAX_BLOCK_ROWS = 8192            # (8192, 128) f32 = 4 MiB block, 8 MiB double-buffered


def _detect_num_parts():
    """2 parts only on v7x (2 TensorCores/chip); 1 elsewhere (v5e/v6e have a
    single TC, so a 2-part 'parallel' axis would just be a serial loop)."""
    # TODO(synk): verify plain "parallel" actually shards the part axis across
    # v7x TensorCores; if not, switch to pltpu.CORE_PARALLEL / pl.core_map.
    try:
        kind = jax.devices()[0].device_kind.lower()
    except Exception:
        return 1
    for old in ("v2", "v3", "v4", "v5", "v6"):
        if old in kind:
            return 1
    return 2 if "7" in kind else 1


_NUM_PARTS = _detect_num_parts()


def _minmax_kernel(x_ref, min_out_ref, max_out_ref, min_acc, max_acc, *,
                   block_rows, total_blocks, part0_blocks, tail_rows,
                   needs_mask, has_inactive, native_fold):
    p = pl.program_id(0)            # part ("parallel"; megacore-shardable)
    i = pl.program_id(1)            # block within part (reduction axis)
    b = p * part0_blocks + i        # global block index owned by this step

    @pl.when(i == 0)
    def _():
        min_acc[...] = jnp.full_like(min_acc, jnp.inf)
        max_acc[...] = jnp.full_like(max_acc, -jnp.inf)

    ntiles = block_rows // _SUBLANES

    def _fold(blk_min, blk_max):
        min_acc[...] = jnp.minimum(min_acc[...], blk_min.astype(jnp.float32))
        max_acc[...] = jnp.maximum(max_acc[...], blk_max.astype(jnp.float32))

    def _fold_fast():
        # Interior blocks: pure elementwise min/max over (8,128) vreg tiles.
        # bf16/f32 inputs are reduced natively; other dtypes cast per block.
        xv = x_ref[...]
        if not native_fold:
            xv = xv.astype(jnp.float32)
        xt = xv.reshape(ntiles, _SUBLANES, _LANES)
        _fold(jnp.min(xt, axis=0), jnp.max(xt, axis=0))

    def _fold_tail():
        # Only the single partial last block pays for iota/where masking:
        # rows past the logical end hold undefined (edge-padded) data and are
        # neutralized with +/-inf.
        xf = x_ref[...].astype(jnp.float32)
        ridx = lax.broadcasted_iota(jnp.int32, (block_rows, _LANES), 0)
        valid = ridx < tail_rows
        xmin = jnp.where(valid, xf, jnp.inf).reshape(ntiles, _SUBLANES, _LANES)
        xmax = jnp.where(valid, xf, -jnp.inf).reshape(ntiles, _SUBLANES, _LANES)
        _fold(jnp.min(xmin, axis=0), jnp.max(xmax, axis=0))

    if needs_mask:
        is_tail = b == total_blocks - 1
        fast = jnp.logical_not(is_tail)
        if has_inactive:
            fast = jnp.logical_and(fast, b < total_blocks)
        pl.when(fast)(_fold_fast)
        pl.when(is_tail)(_fold_tail)
    elif has_inactive:
        pl.when(b < total_blocks)(_fold_fast)
    else:
        _fold_fast()

    # In-kernel finalize: one cross-lane reduce per part (the XLU is otherwise
    # idle) so downstream XLA only combines <= num_parts scalars.
    @pl.when(i == pl.num_programs(1) - 1)
    def _():
        min_out_ref[...] = jnp.min(min_acc[...]).reshape(1, 1)
        max_out_ref[...] = jnp.max(max_acc[...]).reshape(1, 1)


def _minmax_scalars(x2d, *, block_rows, total_blocks, num_parts, part0_blocks,
                    tail_rows, needs_mask, has_inactive, native_fold):
    """Pallas streaming reduction of x2d (rows, 128) -> two (num_parts,1,1)
    per-part scalars."""

    def x_index_map(p, i):
        b = p * part0_blocks + i
        if has_inactive:
            # Overflow steps (only on v7x with an odd block count) re-read the
            # last real block; the in-kernel pl.when skips their contribution.
            b = jnp.minimum(b, total_blocks - 1)
        return (b, 0)

    out_spec = pl.BlockSpec((None, 1, 1), lambda p, i: (p, 0, 0))

    kernel = functools.partial(
        _minmax_kernel,
        block_rows=block_rows, total_blocks=total_blocks,
        part0_blocks=part0_blocks, tail_rows=tail_rows,
        needs_mask=needs_mask, has_inactive=has_inactive,
        native_fold=native_fold)

    return pl.pallas_call(
        kernel,
        out_shape=(jax.ShapeDtypeStruct((num_parts, 1, 1), jnp.float32),
                   jax.ShapeDtypeStruct((num_parts, 1, 1), jnp.float32)),
        grid_spec=pltpu.PrefetchScalarGridSpec(
            num_scalar_prefetch=0,
            grid=(num_parts, part0_blocks),
            in_specs=[pl.BlockSpec((block_rows, _LANES), x_index_map)],
            out_specs=(out_spec, out_spec),
            scratch_shapes=[pltpu.VMEM((_SUBLANES, _LANES), jnp.float32),
                            pltpu.VMEM((_SUBLANES, _LANES), jnp.float32)],
        ),
        compiler_params=pltpu.CompilerParams(
            dimension_semantics=("parallel", "arbitrary"),
            vmem_limit_bytes=32 * 1024 * 1024,   # safe on v5e/v6e/v7x
        ),
    )(x2d)


@jax.jit
def tensor_min_max(x):
    """Global (min, max) of an arbitrary-shaped tensor (f32 scalars)."""
    if x.size == 0:
        raise ValueError("observer requires a non-empty tensor")
    flat = x.reshape(-1)
    n = flat.shape[0]

    # Tiny or lane-ragged tensors: one fused XLA reduction — lower latency than
    # a pallas_call launch and avoids any padding/slicing HBM copies.
    if n < _TILE or n % _LANES != 0:
        return (jnp.min(flat).astype(jnp.float32),
                jnp.max(flat).astype(jnp.float32))

    rows = n // _LANES
    x2d = flat.reshape(rows, _LANES)   # lane-aligned: free bitcast, no copy

    block_rows = min(_MAX_BLOCK_ROWS, (rows // _SUBLANES) * _SUBLANES)
    total_blocks = -(-rows // block_rows)
    needs_mask = total_blocks * block_rows != rows
    tail_rows = rows - (total_blocks - 1) * block_rows   # valid rows, last block

    num_parts = max(1, min(_NUM_PARTS, total_blocks))
    part0_blocks = -(-total_blocks // num_parts)
    has_inactive = num_parts * part0_blocks > total_blocks

    # bf16/f32 reduce natively on the VPU; other dtypes upcast per block
    # in-kernel (note: |int| > 2^24 loses precision in the f32 accumulator).
    native_fold = x2d.dtype in (jnp.dtype(jnp.float32), jnp.dtype(jnp.bfloat16))

    pmin, pmax = _minmax_scalars(
        x2d, block_rows=block_rows, total_blocks=total_blocks,
        num_parts=num_parts, part0_blocks=part0_blocks, tail_rows=tail_rows,
        needs_mask=needs_mask, has_inactive=has_inactive,
        native_fold=native_fold)

    if num_parts == 1:
        return pmin[0, 0, 0], pmax[0, 0, 0]
    return jnp.min(pmin), jnp.max(pmax)


class MinMaxObserver:
    """JAX/Pallas port of torch.quantization ObserverBase (MinMaxObserver
    concrete behaviour).  dtype in {'qint8','quint8'}, qscheme in
    {'per_tensor_affine','per_tensor_symmetric'}."""

    def __init__(self, dtype="quint8", qscheme="per_tensor_affine"):
        assert qscheme in ("per_tensor_affine", "per_tensor_symmetric")
        assert dtype in ("qint8", "quint8")
        self.dtype = dtype
        self.qscheme = qscheme
        self.eps = float(jnp.finfo(jnp.float32).eps)
        self.min_val = None
        self.max_val = None

    def forward(self, x):
        x_min, x_max = tensor_min_max(x)
        if self.min_val is None:
            self.min_val, self.max_val = x_min, x_max
        else:
            # Device-side running update; no host sync in forward.
            # TODO(synk): could seed the in-kernel accumulators from the
            # previous running min/max via SMEM + input_output_aliases to
            # drop these two tiny XLA ops as well.
            self.min_val = jnp.minimum(self.min_val, x_min)
            self.max_val = jnp.maximum(self.max_val, x_max)
        return x  # observer forward returns the input unchanged

    __call__ = forward

    def calculate_qparams(self):
        return self._calculate_qparams(self.min_val, self.max_val)

    def _calculate_qparams(self, min_val, max_val):
        # Exact port of ObserverBase._calculate_qparams (scalar glue, host-side
        # like torch; pulls the two scalars once).
        if max_val is None or min_val is None:
            return jnp.array([1.0], jnp.float32), jnp.array([0], jnp.int32)
        min_val_f = float(min_val)
        max_val_f = float(max_val)
        assert min_val_f <= max_val_f, (
            "min {} should be less than max {}".format(min_val_f, max_val_f))
        if self.dtype == "qint8":
            qmin, qmax = -128, 127
        else:
            qmin, qmax = 0, 255
        min_val_f = min(0.0, min_val_f)
        max_val_f = max(0.0, max_val_f)
        if max_val_f == min_val_f:
            scale = 1.0
            zero_point = 0
        elif self.qscheme == "per_tensor_symmetric":
            max_val_f = max(-min_val_f, max_val_f)
            scale = max_val_f / ((qmax - qmin) / 2)
            scale = max(scale, self.eps)
            zero_point = 0 if self.dtype == "qint8" else 128
        else:
            scale = (max_val_f - min_val_f) / float(qmax - qmin)
            scale = max(scale, self.eps)
            zero_point = qmin - round(min_val_f / scale)
            zero_point = max(qmin, zero_point)
            zero_point = min(qmax, zero_point)
            zero_point = int(zero_point)
        return (jnp.array([scale], jnp.float32),
                jnp.array([zero_point], jnp.int32))


if __name__ == "__main__":
    key = jax.random.PRNGKey(0)
    k0, k1, k2, k3, k4 = jax.random.split(key, 5)

    # Primary example: small NCHW activation (single-block Pallas path).
    x = jax.random.normal(k0, (2, 4, 16, 16), dtype=jnp.float32)
    obs = MinMaxObserver(dtype="quint8", qscheme="per_tensor_affine")
    y = obs(x)
    jax.block_until_ready(y)
    jax.block_until_ready((obs.min_val, obs.max_val))
    assert abs(float(obs.min_val) - float(jnp.min(x))) < 1e-6
    assert abs(float(obs.max_val) - float(jnp.max(x))) < 1e-6
    assert jnp.allclose(y, x)
    scale, zero_point = obs.calculate_qparams()
    jax.block_until_ready((scale, zero_point))

    # Running-update semantics on a second observation.
    x2 = x * 2.0
    obs(x2)
    jax.block_until_ready((obs.min_val, obs.max_val))
    ref_min2 = float(jnp.minimum(jnp.min(x), jnp.min(x2)))
    ref_max2 = float(jnp.maximum(jnp.max(x), jnp.max(x2)))
    assert abs(float(obs.min_val) - ref_min2) < 1e-6
    assert abs(float(obs.max_val) - ref_max2) < 1e-6

    # Multi-block streaming path (4 MiB blocks).
    x_big = jax.random.normal(k1, (8, 256, 32, 32), dtype=jnp.float32)
    b_min, b_max = tensor_min_max(x_big)
    jax.block_until_ready((b_min, b_max))
    assert abs(float(b_min) - float(jnp.min(x_big))) < 1e-6
    assert abs(float(b_max) - float(jnp.max(x_big))) < 1e-6

    # Masked-tail path: lane-aligned but rows not a multiple of the block.
    x_tail = jax.random.normal(k2, (9, 128), dtype=jnp.float32)
    t_min, t_max = tensor_min_max(x_tail)
    jax.block_until_ready((t_min, t_max))
    assert abs(float(t_min) - float(jnp.min(x_tail))) < 1e-6
    assert abs(float(t_max) - float(jnp.max(x_tail))) < 1e-6

    # Multi-block + masked tail (+ overflow partition on v7x).
    x_odd_blocks = jax.random.normal(k3, (20000, 128), dtype=jnp.float32)
    o_min, o_max = tensor_min_max(x_odd_blocks)
    jax.block_until_ready((o_min, o_max))
    assert abs(float(o_min) - float(jnp.min(x_odd_blocks))) < 1e-6
    assert abs(float(o_max) - float(jnp.max(x_odd_blocks))) < 1e-6

    # Native bf16 fold (no per-block f32 upcast).
    x_bf = jax.random.normal(k4, (32, 128), dtype=jnp.float32).astype(jnp.bfloat16)
    f_min, f_max = tensor_min_max(x_bf)
    jax.block_until_ready((f_min, f_max))
    assert float(f_min) == float(jnp.min(x_bf).astype(jnp.float32))
    assert float(f_max) == float(jnp.max(x_bf).astype(jnp.float32))

    # Ragged (non-lane-aligned) small tensor: fused-XLA fast path.
    x_rag = jax.random.normal(k2, (3, 5, 7, 11), dtype=jnp.float32)
    r_min, r_max = tensor_min_max(x_rag)
    jax.block_until_ready((r_min, r_max))
    assert abs(float(r_min) - float(jnp.min(x_rag))) < 1e-6
    assert abs(float(r_max) - float(jnp.max(x_rag))) < 1e-6

    print("KERNEL_OK")
</pallas_src>

<mosaic_0001>
module attributes {stable_mosaic.version = 11 : i64} {
  func.func @_minmax_kernel(%arg0: i32, %arg1: i32, %arg2: memref<16x128xf32, #tpu.memory_space<vmem>>, %arg3: memref<1x1x1xf32, #tpu.memory_space<vmem>>, %arg4: memref<1x1x1xf32, #tpu.memory_space<vmem>>, %arg5: memref<8x128xf32, #tpu.memory_space<vmem>>, %arg6: memref<8x128xf32, #tpu.memory_space<vmem>>) attributes {dimension_semantics = [#tpu.dimension_semantics<parallel>, #tpu.dimension_semantics<arbitrary>], iteration_bounds = array<i64: 1, 1>, scalar_prefetch = 0 : i64, scratch_operands = 2 : i64, tpu.core_type = #tpu.core_type<tc>, window_params = [{transform_indices = @transform_0, window_bounds = array<i64: 16, 128>}, {transform_indices = @transform_1, window_bounds = array<i64: 1, 1, 1>}, {transform_indices = @transform_2, window_bounds = array<i64: 1, 1, 1>}]} {
    %c0_i32 = arith.constant 0 : i32
    %0 = arith.cmpi eq, %arg1, %c0_i32 : i32
    %1 = arith.extui %0 : i1 to i32
    %c0_i32_0 = arith.constant 0 : i32
    %2 = arith.cmpi ne, %1, %c0_i32_0 : i32
    scf.if %2 {
      %cst_13 = arith.constant 0x7F800000 : f32
      %16 = vector.broadcast %cst_13 : f32 to vector<8x128xf32>
      %c0_14 = arith.constant 0 : index
      %c0_15 = arith.constant 0 : index
      %17 = vector.load %arg5[%c0_14, %c0_15] : memref<8x128xf32, #tpu.memory_space<vmem>>, vector<8x128xf32>
      tpu.vector_store %arg5[%c0_14, %c0_15], %16 {strides = array<i32>} : memref<8x128xf32, #tpu.memory_space<vmem>>, vector<8x128xf32>,
      %cst_16 = arith.constant 0xFF800000 : f32
      %18 = vector.broadcast %cst_16 : f32 to vector<8x128xf32>
      %c0_17 = arith.constant 0 : index
      %c0_18 = arith.constant 0 : index
      %19 = vector.load %arg6[%c0_17, %c0_18] : memref<8x128xf32, #tpu.memory_space<vmem>>, vector<8x128xf32>
      tpu.vector_store %arg6[%c0_17, %c0_18], %18 {strides = array<i32>} : memref<8x128xf32, #tpu.memory_space<vmem>>, vector<8x128xf32>,
    } else {
    }
    %c0 = arith.constant 0 : index
    %c0_1 = arith.constant 0 : index
    %3 = vector.load %arg2[%c0, %c0_1] : memref<16x128xf32, #tpu.memory_space<vmem>>, vector<16x128xf32>
    %4 = vector.shape_cast %3 : vector<16x128xf32> to vector<2x8x128xf32>
    %cst = arith.constant dense<0x7F800000> : vector<8x128xf32>
    %5 = vector.multi_reduction <minimumf>, %4, %cst [0] : vector<2x8x128xf32> to vector<8x128xf32>
    %cst_2 = arith.constant dense<0xFF800000> : vector<8x128xf32>
    %6 = vector.multi_reduction <maximumf>, %4, %cst_2 [0] : vector<2x8x128xf32> to vector<8x128xf32>
    %c0_3 = arith.constant 0 : index
    %c0_4 = arith.constant 0 : index
    %7 = vector.load %arg5[%c0_3, %c0_4] : memref<8x128xf32, #tpu.memory_space<vmem>>, vector<8x128xf32>
    %8 = arith.minimumf %7, %5 : vector<8x128xf32>
    %c0_5 = arith.constant 0 : index
    %c0_6 = arith.constant 0 : index
    %9 = vector.load %arg5[%c0_5, %c0_6] : memref<8x128xf32, #tpu.memory_space<vmem>>, vector<8x128xf32>
    tpu.vector_store %arg5[%c0_5, %c0_6], %8 {strides = array<i32>} : memref<8x128xf32, #tpu.memory_space<vmem>>, vector<8x128xf32>,
    %c0_7 = arith.constant 0 : index
    %c0_8 = arith.constant 0 : index
    %10 = vector.load %arg6[%c0_7, %c0_8] : memref<8x128xf32, #tpu.memory_space<vmem>>, vector<8x128xf32>
    %11 = arith.maximumf %10, %6 : vector<8x128xf32>
    %c0_9 = arith.constant 0 : index
    %c0_10 = arith.constant 0 : index
    %12 = vector.load %arg6[%c0_9, %c0_10] : memref<8x128xf32, #tpu.memory_space<vmem>>, vector<8x128xf32>
    tpu.vector_store %arg6[%c0_9, %c0_10], %11 {strides = array<i32>} : memref<8x128xf32, #tpu.memory_space<vmem>>, vector<8x128xf32>,
    %c0_i32_11 = arith.constant 0 : i32
    %13 = arith.cmpi eq, %arg1, %c0_i32_11 : i32
    %14 = arith.extui %13 : i1 to i32
    %c0_i32_12 = arith.constant 0 : i32
    %15 = arith.cmpi ne, %14, %c0_i32_12 : i32
    scf.if %15 {
      %c0_13 = arith.constant 0 : index
      %c0_14 = arith.constant 0 : index
      %16 = vector.load %arg5[%c0_13, %c0_14] : memref<8x128xf32, #tpu.memory_space<vmem>>, vector<8x128xf32>
      %17 = vector.shape_cast %16 : vector<8x128xf32> to vector<1x8x128xf32>
      %cst_15 = arith.constant dense<0x7F800000> : vector<1xf32>
      %18 = vector.multi_reduction <minimumf>, %17, %cst_15 [1, 2] : vector<1x8x128xf32> to vector<1xf32>
      %19 = vector.shape_cast %18 : vector<1xf32> to vector<1x1x1xf32>
      %20 = vector.extract %19[0, 0, 0] : f32 from vector<1x1x1xf32>
      %21 = vector.broadcast %20 : f32 to vector<1x1xf32>
      %c0_16 = arith.constant 0 : index
      %c0_17 = arith.constant 0 : index
      %c0_18 = arith.constant 0 : index
      %22 = vector.load %arg3[%c0_16, %c0_17, %c0_18] : memref<1x1x1xf32, #tpu.memory_space<vmem>>, vector<1x1x1xf32>
      %23 = vector.shape_cast %22 : vector<1x1x1xf32> to vector<1x1xf32>
      %24 = vector.shape_cast %21 : vector<1x1xf32> to vector<1x1x1xf32>
      tpu.vector_store %arg3[%c0_16, %c0_17, %c0_18], %24 {strides = array<i32>} : memref<1x1x1xf32, #tpu.memory_space<vmem>>, vector<1x1x1xf32>,
      %c0_19 = arith.constant 0 : index
      %c0_20 = arith.constant 0 : index
      %25 = vector.load %arg6[%c0_19, %c0_20] : memref<8x128xf32, #tpu.memory_space<vmem>>, vector<8x128xf32>
      %26 = vector.shape_cast %25 : vector<8x128xf32> to vector<1x8x128xf32>
      %cst_21 = arith.constant dense<0xFF800000> : vector<1xf32>
      %27 = vector.multi_reduction <maximumf>, %26, %cst_21 [1, 2] : vector<1x8x128xf32> to vector<1xf32>
      %28 = vector.shape_cast %27 : vector<1xf32> to vector<1x1x1xf32>
      %29 = vector.extract %28[0, 0, 0] : f32 from vector<1x1x1xf32>
      %30 = vector.broadcast %29 : f32 to vector<1x1xf32>
      %c0_22 = arith.constant 0 : index
      %c0_23 = arith.constant 0 : index
      %c0_24 = arith.constant 0 : index
      %31 = vector.load %arg4[%c0_22, %c0_23, %c0_24] : memref<1x1x1xf32, #tpu.memory_space<vmem>>, vector<1x1x1xf32>
      %32 = vector.shape_cast %31 : vector<1x1x1xf32> to vector<1x1xf32>
      %33 = vector.shape_cast %30 : vector<1x1xf32> to vector<1x1x1xf32>
      tpu.vector_store %arg4[%c0_22, %c0_23, %c0_24], %33 {strides = array<i32>} : memref<1x1x1xf32, #tpu.memory_space<vmem>>, vector<1x1x1xf32>,
    } else {
    }
    return
  }
  func.func @transform_0(%arg0: i32, %arg1: i32) -> (i32, i32) {
    %c1_i32 = arith.constant 1 : i32
    %0 = arith.muli %arg0, %c1_i32 : i32
    %1 = arith.addi %0, %arg1 : i32
    %c0_i32 = arith.constant 0 : i32
    %c0_i32_0 = arith.constant 0 : i32
    return %1, %c0_i32 : i32, i32
  }
  func.func @transform_1(%arg0: i32, %arg1: i32) -> (i32, i32, i32) {
    %c0_i32 = arith.constant 0 : i32
    %c0_i32_0 = arith.constant 0 : i32
    %c0_i32_1 = arith.constant 0 : i32
    return %arg0, %c0_i32, %c0_i32_0 : i32, i32, i32
  }
  func.func @transform_2(%arg0: i32, %arg1: i32) -> (i32, i32, i32) {
    %c0_i32 = arith.constant 0 : i32
    %c0_i32_0 = arith.constant 0 : i32
    %c0_i32_1 = arith.constant 0 : i32
    return %arg0, %c0_i32, %c0_i32_0 : i32, i32, i32
  }
}

</mosaic_0001>

<llo_original>
// kernel: tensor_min_max.1
$region0: #{tensor_min_max.1}
  #allocation0 [shape = 'u32[]', space=smem, size = 0x4, offset = 0x4, fixed_abs, tag = 'smem constant byte address 0x4 - core index']
  #allocation1 [shape = 'u32[72,128]{1,0:T(1,128)}', space=vmem, size = 0x9000, scoped, tag = 'internal scratch']
  #allocation2 [shape = 'f32[8,128]{1,0:T(8,128)}', space=vmem, size = 0x1000, scoped, tag = 'scratch operand']
  #allocation3 [shape = 'f32[8,128]{1,0:T(8,128)}', space=vmem, size = 0x1000, scoped, tag = 'scratch operand']
  %s0 = inlined_call_operand.vmem [shape: f32[16,128], index: 0, kind: input, shape index: {}]
  %s1 = inlined_call_operand.hbm [shape: f32[1,1,1], index: 1, kind: output, shape index: {0}]
  %s2 = inlined_call_operand.hbm [shape: f32[1,1,1], index: 2, kind: output, shape index: {1}]
  %3 = xla_tuple %s1, %s2
  %s4 = sld [smem:[#allocation0]]
  $region30: #{tensor_min_max.1} parent=0
    _
  %s6 = ssub.s32 1, %s4
  %s7 = scalar_select 0, %s6, %s4
  $region1: #{tensor_min_max.1} parent=0
    #allocation4 [shape = 'u8[512]{0}', space=vmem, size = 0x400, scoped, tag = 'output window, operand 0, single buffered']
    #allocation5 [shape = 's32[1]{0}', space=sflag, size = 0x4, scoped, tag = 'scoped memory for tensor_min_max.1']
    #allocation6 [shape = 'u8[512]{0}', space=vmem, size = 0x400, scoped, tag = 'output window, operand 1, single buffered']
    #allocation7 [shape = 's32[1]{0}', space=sflag, size = 0x4, scoped, tag = 'scoped memory for tensor_min_max.1']
    %8 = vsyncpa [#allocation5], 0
    %9 = vsyncpa [#allocation7], 0
    // Predicated region
    $region2: #{tensor_min_max.1} parent=1 // pred_check
      _
    $region3: #{tensor_min_max.1} parent=1 // pred_check_branch
      %11 = sbr.rel (0) target = $region5
    $region4: #{tensor_min_max.1} parent=1 // pred_region
      %s12 = sadd.s32 0, 0
      %s13 = smul.u32 2, %s12
      %p14 = scmp.lt.s32.totalorder %s13, 1
      %s15 = scalar_select %p14, %s13, 1
      %s16 = smul.addr %s15, 8
      %s17 = scalar_lea.vmem %s0, %s16
      %s18 = sadd.s32 0, 0
      %s19 = smul.u32 2, %s18
    $region5: #{tensor_min_max.1} parent=1 // pred_fallthru
      _
    %s20 = sadd.s32 0, 0
    %s21 = smul.u32 2, %s20
    %p22 = scmp.lt.s32.totalorder %s21, 1
    %s23 = scalar_select %p22, %s21, 1
    %s24 = smul.addr %s23, 8
    %s25 = scalar_lea.vmem %s0, %s24
    %s26 = sadd.s32 0, 0
    %s27 = smul.u32 2, %s26
    %p28 = scmp.lt.s32.totalorder %s27, 1
    %s29 = scalar_select %p28, %s27, 1
    %s30 = smul.addr %s29, 8
    %s31 = scalar_lea.vmem %s0, %s30
    %s32 = sadd.s32 0, 0
    %s33 = smul.u32 2, %s32
    %p34 = scmp.eq.s32.totalorder 0, 0
    // Predicated region
    $region6: #{tensor_min_max.1} parent=1 // pred_check
      %p35 = pneg %p34
    $region7: #{tensor_min_max.1} parent=1 // pred_check_branch
      %37 = sbr.rel (%p35) target = $region9
    $region8: #{tensor_min_max.1} parent=1 // pred_region
      %38 = vst [vmem:[#allocation2] sm:$0xff] inf
      %39 = vst [vmem:[#allocation3] sm:$0xff] -inf
    $region9: #{tensor_min_max.1} parent=1 // pred_fallthru
      _
    %v40 = vld [vmem:[%s31] sm:$0xff]
    %v41 = vld [vmem:[%s31 + $0x8] sm:$0xff]
    %v42 = vmin.f32 %v40, %v41
    %v43 = vmax.f32 %v40, %v41
    %v44 = vld [vmem:[#allocation2] sm:$0xff]
    %v45 = vmin.f32 %v44, %v42
    %46 = vst [vmem:[#allocation2] sm:$0xff] %v45
    %v47 = vld [vmem:[#allocation3] sm:$0xff]
    %v48 = vmax.f32 %v47, %v43
    %49 = vst [vmem:[#allocation3] sm:$0xff] %v48
    // Predicated region
    $region10: #{tensor_min_max.1} parent=1 // pred_check
      %p50 = pneg %p34
    $region11: #{tensor_min_max.1} parent=1 // pred_check_branch
      %52 = sbr.rel (%p50) target = $region13
    $region12: #{tensor_min_max.1} parent=1 // pred_region
      %v53 = vld [vmem:[#allocation2] sm:$0xff]
      %54 = vmin.xlane.f32.xlu0 %v53
      %v55 = vpop.xlane.xlu0 %54
      %v56 = vrot.slane %v55, 4
      %v57 = vmin.f32 %v55, %v56
      %v58 = vrot.slane %v57, 2
      %v59 = vmin.f32 %v57, %v58
      %v60 = vrot.slane %v59, 1
      %v61 = vmin.f32 %v59, %v60
      %s62 = vtos %v61
      %v63 = vstv %s62
      %vm64 = vcmask 0
      %65 = vst.msk [vmem:[#allocation4] sm:$0x1] %vm64, %v63
      %v66 = vld [vmem:[#allocation3] sm:$0xff]
      %67 = vmax.xlane.f32.xlu0 %v66
      %v68 = vpop.xlane.xlu0 %67
      %v69 = vrot.slane %v68, 4
      %v70 = vmax.f32 %v68, %v69
      %v71 = vrot.slane %v70, 2
      %v72 = vmax.f32 %v70, %v71
      %v73 = vrot.slane %v72, 1
      %v74 = vmax.f32 %v72, %v73
      %s75 = vtos %v74
      %v76 = vstv %s75
      %77 = vst.msk [vmem:[#allocation6] sm:$0x1] %vm64, %v76
    $region13: #{tensor_min_max.1} parent=1 // pred_fallthru
      _
    // Predicated region
    $region14: #{tensor_min_max.1} parent=1 // pred_check
      _
    $region15: #{tensor_min_max.1} parent=1 // pred_check_branch
      %79 = sbr.rel (0) target = $region17
    $region16: #{tensor_min_max.1} parent=1 // pred_region
      %81 = vsyncadd [#allocation5], 0
      %s83 = sshll.u32 [#allocation4], 4
      %s84 = int_to_ptr.vmem [resolvable:$true] %s83
      %s85 = sshll.u32 %s1, 4
      %s86 = int_to_ptr.hbm [resolvable:$true] %s85
      %88 = dma.vmem_to_hbm [thread:$0]  %s84, 16, %s86, [#allocation5]
    $region17: #{tensor_min_max.1} parent=1 // pred_fallthru
      _
    // Predicated region
    $region18: #{tensor_min_max.1} parent=1 // pred_check
      _
    $region19: #{tensor_min_max.1} parent=1 // pred_check_branch
      %90 = sbr.rel (0) target = $region21
    $region20: #{tensor_min_max.1} parent=1 // pred_region
      %92 = vsyncadd [#allocation7], 0
      %s94 = sshll.u32 [#allocation6], 4
      %s95 = int_to_ptr.vmem [resolvable:$true] %s94
      %s96 = sshll.u32 %s2, 4
      %s97 = int_to_ptr.hbm [resolvable:$true] %s96
      %99 = dma.vmem_to_hbm [thread:$0]  %s95, 16, %s97, [#allocation7]
    $region21: #{tensor_min_max.1} parent=1 // pred_fallthru
      _
    // Predicated region
    $region22: #{tensor_min_max.1} parent=1 // pred_check
      _
    $region23: #{tensor_min_max.1} parent=1 // pred_check_branch
      %101 = sbr.rel (0) target = $region25
    $region24: #{tensor_min_max.1} parent=1 // pred_region
      %103 = dma.done [#allocation5], 16
    $region25: #{tensor_min_max.1} parent=1 // pred_fallthru
      _
    // Predicated region
    $region26: #{tensor_min_max.1} parent=1 // pred_check
      _
    $region27: #{tensor_min_max.1} parent=1 // pred_check_branch
      %105 = sbr.rel (0) target = $region29
    $region28: #{tensor_min_max.1} parent=1 // pred_region
      %107 = dma.done [#allocation7], 16
    $region29: #{tensor_min_max.1} parent=1 // pred_fallthru
      _
    %108 = vsyncpa [#allocation5], 1
    %109 = vsyncpa [#allocation7], 1

</llo_original>
